<compile_context>
chip_gen: v5e
topology: v5e:2x2
jax: 0.10.0
libtpu: 0.0.40
codegen_flags: <defaults>
</compile_context>

<pallas_src>
import functools

import jax
import jax.numpy as jnp
from jax import lax
from jax.experimental import pallas as pl
from jax.experimental.pallas import tpu as pltpu


def _round_up(x, m):
    return (x + m - 1) // m * m


def _sal_head_kernel(Wp, use_bf16, xp_ref, w_ref, b1_ref, w2_ref, b2_ref, o_ref):
    # xp_ref: (1, C, L_in)   flat zero-padded (pseudo-)images, channels on sublanes,
    #                        images in S-lane slots back-to-back (+ zero halo tail)
    # w_ref:  (9, C, C)      BN-folded 3x3 weights, tap-major: w_ref[dy*3+dx, o, i]
    # b1_ref: (C, 1)         folded conv + BN bias
    # w2_ref: (C, 1)         1x1 conv weights
    # b2_ref: (1,)  in SMEM  1x1 conv bias (scalar)
    # o_ref:  (1, 1, L_out)  lane-dense (128-aligned) output span
    C = w_ref.shape[1]
    L_out = o_ref.shape[2]

    # 3x3 conv (+ folded BN scale): 9 accumulating dots over static lane-offset
    # tap slices of the flat padded image.  No staging/concat buffer is built.
    acc = jnp.zeros((C, L_out), jnp.float32)
    for t in range(9):
        dy, dx = t // 3, t % 3
        tap = xp_ref[0, :, pl.ds(dy * Wp + dx, L_out)]          # (C, L_out)
        w_t = w_ref[t]                                          # (C, C)
        if use_bf16:                                            # v6e/v7x MXU-native operands
            tap = tap.astype(jnp.bfloat16)
            w_t = w_t.astype(jnp.bfloat16)
        acc = acc + jnp.dot(w_t, tap, preferred_element_type=jnp.float32)
    # TODO(synk): the dx=1,2 taps could be derived from the dx=0 slice with
    # pltpu.roll (XLU rotation) instead of separate unaligned slice loads.

    y = jnp.maximum(acc + b1_ref[...], 0.0)                     # folded bias + ReLU

    # 1x1 conv (C -> 1): VPU multiply + cross-sublane reduce; scalar bias from SMEM.
    out = jnp.sum(y * w2_ref[...], axis=0, keepdims=True) + b2_ref[0]
    o_ref[...] = out[None]                                      # (1, 1, L_out)


def sal_head_pallas(x_nchw, w1_oihw, b1, gamma, beta, rmean, rvar, w2_oihw, b2,
                    eps=1e-5, *, row_tile=None, images_per_step=None,
                    use_bf16_mxu=False):
    N, C, H, W = x_nchw.shape
    Wp = W + 2

    # ---- fold BatchNorm (inference) into the 3x3 conv ----
    scale = gamma / jnp.sqrt(rvar + eps)                        # (C,)
    w1f = w1_oihw * scale[:, None, None, None]                  # (C, C, 3, 3)
    b1f = (b1 - rmean) * scale + beta                           # (C,)

    # tap-major weights: (9, C_out, C_in), t = dy*3 + dx
    w_taps = jnp.transpose(w1f, (2, 3, 0, 1)).reshape(9, C, C)
    w2_col = w2_oihw.reshape(C, 1)
    b2_vec = b2.reshape(1).astype(jnp.float32)                  # scalar in SMEM

    # ---- wrapper-side spatial row tiling (2 halo rows duplicated in HBM) ----
    if row_tile is None:
        row_tile = H            # whole image per pseudo-image at small sizes
        # TODO(synk): auto-pick a smaller row_tile when C*(H+2)*(W+2)*4B exceeds
        # the per-step VMEM budget (large images).
    TH = max(1, min(row_tile, H))
    H_pad = _round_up(H, TH)
    n_row_tiles = H_pad // TH

    # zero-pad (SAME for 3x3) + bottom rows up to H_pad, then cut overlapping row tiles
    xpad = jnp.pad(x_nchw, ((0, 0), (0, 0), (1, 1 + H_pad - H), (1, 1)))  # (N,C,H_pad+2,Wp)
    tiles = [xpad[:, :, r * TH: r * TH + TH + 2, :] for r in range(n_row_tiles)]
    xt = jnp.stack(tiles, axis=1)                               # (N, n_tiles, C, TH+2, Wp)

    M = N * n_row_tiles                                         # pseudo-images
    Pf = (TH + 2) * Wp                                          # flat padded length
    Q = TH * Wp - 2                                             # valid flat output span
    xt = xt.reshape(M, C, Pf)

    # ---- pack pseudo-images into 128-aligned lane slots, group Nb per grid step ----
    S = _round_up(Pf, 128)                                      # per-image lane slot
    halo = 2 * Wp + 2                                           # max tap offset
    H128 = _round_up(halo, 128)                                 # zero halo tail (aligned)

    if images_per_step is None:
        Nb = max(1, min(M, 4096 // S))                          # a few K lanes per step
        if M >= 2:
            Nb = max(1, min(Nb, M // 2))                        # keep >=2 steps for v7x's 2 TCs
    else:
        Nb = max(1, min(images_per_step, M))
    G = -(-M // Nb)
    M_pad = G * Nb

    xt = jnp.pad(xt, ((0, M_pad - M), (0, 0), (0, S - Pf)))     # (M_pad, C, S)
    xt = xt.reshape(G, Nb, C, S).transpose(0, 2, 1, 3).reshape(G, C, Nb * S)
    xt = jnp.pad(xt, ((0, 0), (0, 0), (0, H128)))               # (G, C, Nb*S + H128)
    L_in = Nb * S + H128
    L_out = Nb * S                                              # multiple of 128 (lane-dense)

    # explicit scoped-VMEM limit from the chosen block sizes (with headroom)
    vmem_needed = 4 * (2 * C * L_in + 2 * L_out + 4 * C * L_out) + (1 << 16)
    vmem_limit = int(min(48 * 2 ** 20, max(16 * 2 ** 20, 2 * vmem_needed)))

    kernel = functools.partial(_sal_head_kernel, Wp, use_bf16_mxu)
    out = pl.pallas_call(
        kernel,
        out_shape=jax.ShapeDtypeStruct((G, 1, L_out), jnp.float32),
        grid_spec=pltpu.PrefetchScalarGridSpec(
            num_scalar_prefetch=0,
            grid=(G,),
            in_specs=[
                pl.BlockSpec((1, C, L_in), lambda g: (g, 0, 0)),
                pl.BlockSpec((9, C, C), lambda g: (0, 0, 0)),
                pl.BlockSpec((C, 1), lambda g: (0, 0)),
                pl.BlockSpec((C, 1), lambda g: (0, 0)),
                pl.BlockSpec(memory_space=pltpu.MemorySpace.SMEM),
            ],
            out_specs=pl.BlockSpec((1, 1, L_out), lambda g: (g, 0, 0)),
        ),
        compiler_params=pltpu.CompilerParams(
            dimension_semantics=("parallel",),
            vmem_limit_bytes=vmem_limit),
    )(xt, w_taps, b1f.reshape(C, 1), w2_col, b2_vec)

    # ---- unpack: flat lane j = y_local*Wp + x within each pseudo-image's slot ----
    out = out.reshape(M_pad, S)[:M, :TH * Wp]                   # (M, TH*Wp)
    out = out.reshape(N, n_row_tiles, TH, Wp)[:, :, :, :W]      # drop padded columns
    out = out.reshape(N, n_row_tiles * TH, W)[:, :H, :]         # drop padded rows
    return out[:, None, :, :]                                   # (N, 1, H, W)


def sal_head_reference(x_nchw, w1_oihw, b1, gamma, beta, rmean, rvar, w2_oihw, b2,
                       eps=1e-5):
    """Pure-JAX reference (matches the PyTorch forward in eval mode)."""
    y = lax.conv_general_dilated(
        x_nchw, w1_oihw, window_strides=(1, 1), padding="SAME",
        dimension_numbers=("NCHW", "OIHW", "NCHW"))
    y = y + b1[None, :, None, None]
    scale = gamma / jnp.sqrt(rvar + eps)
    y = (y - rmean[None, :, None, None]) * scale[None, :, None, None] \
        + beta[None, :, None, None]
    y = jnp.maximum(y, 0.0)
    out = lax.conv_general_dilated(
        y, w2_oihw, window_strides=(1, 1), padding="VALID",
        dimension_numbers=("NCHW", "OIHW", "NCHW"))
    return out + b2[None, :, None, None]


def _run_case(key, N, C, H, W, tol=1e-4, **kw):
    kx, kw1, kb1, kg, kbt, kw2, kb2 = jax.random.split(key, 7)
    x = jax.random.normal(kx, (N, C, H, W), jnp.float32)
    # synthetic parameters, PyTorch layouts (Conv2d weight = OIHW)
    w1 = jax.random.normal(kw1, (C, C, 3, 3), jnp.float32) * 0.1
    b1 = jax.random.normal(kb1, (C,), jnp.float32) * 0.1
    gamma = 1.0 + 0.1 * jax.random.normal(kg, (C,), jnp.float32)
    beta = 0.1 * jax.random.normal(kbt, (C,), jnp.float32)
    rmean = 0.1 * jnp.arange(C, dtype=jnp.float32)
    rvar = 1.0 + 0.1 * jnp.arange(C, dtype=jnp.float32)
    w2 = jax.random.normal(kw2, (1, C, 1, 1), jnp.float32) * 0.1
    b2 = jax.random.normal(kb2, (1,), jnp.float32) * 0.1

    out = sal_head_pallas(x, w1, b1, gamma, beta, rmean, rvar, w2, b2, **kw)
    out = jax.block_until_ready(out)
    ref = sal_head_reference(x, w1, b1, gamma, beta, rmean, rvar, w2, b2)
    assert out.shape == (N, 1, H, W), out.shape
    err = float(jnp.max(jnp.abs(out - ref)))
    assert jnp.allclose(out, ref, atol=tol, rtol=tol), err
    return err


if __name__ == "__main__":
    key = jax.random.PRNGKey(0)
    k1, k2, k3 = jax.random.split(key, 3)

    # main case: batch=2, channels=4, 16x16 (one image per grid step -> 2 parallel steps)
    _run_case(k1, 2, 4, 16, 16)

    # exercise wrapper-side row tiling (2-row halo) + multi-image grouping per grid step
    _run_case(k2, 3, 4, 20, 12, row_tile=8, images_per_step=4)

    # bf16 MXU-operand path (v6e/v7x recommendation); validated at loose tolerance
    _run_case(k3, 2, 4, 16, 16, use_bf16_mxu=True, tol=1e-1)

    print("KERNEL_OK")
</pallas_src>

<mosaic_0001>
module attributes {stable_mosaic.version = 11 : i64} {
  func.func @_sal_head_kernel(%arg0: i32, %arg1: memref<1x4x512xf32, #tpu.memory_space<vmem>>, %arg2: memref<9x4x4xf32, #tpu.memory_space<vmem>>, %arg3: memref<4x1xf32, #tpu.memory_space<vmem>>, %arg4: memref<4x1xf32, #tpu.memory_space<vmem>>, %arg5: memref<1xf32, #tpu.memory_space<smem>>, %arg6: memref<1x1x384xf32, #tpu.memory_space<vmem>>) attributes {dimension_semantics = [#tpu.dimension_semantics<parallel>], iteration_bounds = array<i64: 2>, scalar_prefetch = 0 : i64, scratch_operands = 0 : i64, tpu.core_type = #tpu.core_type<tc>, window_params = [{transform_indices = @transform_0, window_bounds = array<i64: 1, 4, 512>}, {pipeline_mode = #tpu.pipeline_mode<synchronous>, transform_indices = @transform_1, window_bounds = array<i64: 9, 4, 4>}, {pipeline_mode = #tpu.pipeline_mode<synchronous>, transform_indices = @transform_2, window_bounds = array<i64: 4, 1>}, {pipeline_mode = #tpu.pipeline_mode<synchronous>, transform_indices = @transform_3, window_bounds = array<i64: 4, 1>}, {transform_indices = @transform_4, window_bounds = array<i64: 1>}, {transform_indices = @transform_5, window_bounds = array<i64: 1, 1, 384>}]} {
    %cst = arith.constant 0.000000e+00 : f32
    %0 = vector.broadcast %cst : f32 to vector<4x384xf32>
    %c0 = arith.constant 0 : index
    %c0_0 = arith.constant 0 : index
    %c0_1 = arith.constant 0 : index
    %1 = vector.load %arg1[%c0, %c0_0, %c0_1] : memref<1x4x512xf32, #tpu.memory_space<vmem>>, vector<1x4x384xf32>
    %2 = vector.shape_cast %1 : vector<1x4x384xf32> to vector<4x384xf32>
    %c0_2 = arith.constant 0 : index
    %c0_3 = arith.constant 0 : index
    %c0_4 = arith.constant 0 : index
    %3 = vector.load %arg2[%c0_2, %c0_3, %c0_4] : memref<9x4x4xf32, #tpu.memory_space<vmem>>, vector<1x4x4xf32>
    %4 = vector.shape_cast %3 : vector<1x4x4xf32> to vector<4x4xf32>
    %cst_5 = arith.constant dense<0.000000e+00> : vector<4x384xf32>
    %5 = tpu.matmul %4, %2, %cst_5 {dimension_numbers = #tpu.dot_dimension_numbers<[1], [0], [0], [1], [0, 0, 1, 1], [], []>} : vector<4x4xf32>, vector<4x384xf32>, vector<4x384xf32> -> vector<4x384xf32>
    %6 = arith.addf %0, %5 : vector<4x384xf32>
    %c0_6 = arith.constant 0 : index
    %c0_7 = arith.constant 0 : index
    %c1 = arith.constant 1 : index
    %7 = vector.load %arg1[%c0_6, %c0_7, %c1] : memref<1x4x512xf32, #tpu.memory_space<vmem>>, vector<1x4x384xf32>
    %8 = vector.shape_cast %7 : vector<1x4x384xf32> to vector<4x384xf32>
    %c1_8 = arith.constant 1 : index
    %c0_9 = arith.constant 0 : index
    %c0_10 = arith.constant 0 : index
    %9 = vector.load %arg2[%c1_8, %c0_9, %c0_10] : memref<9x4x4xf32, #tpu.memory_space<vmem>>, vector<1x4x4xf32>
    %10 = vector.shape_cast %9 : vector<1x4x4xf32> to vector<4x4xf32>
    %cst_11 = arith.constant dense<0.000000e+00> : vector<4x384xf32>
    %11 = tpu.matmul %10, %8, %cst_11 {dimension_numbers = #tpu.dot_dimension_numbers<[1], [0], [0], [1], [0, 0, 1, 1], [], []>} : vector<4x4xf32>, vector<4x384xf32>, vector<4x384xf32> -> vector<4x384xf32>
    %12 = arith.addf %6, %11 : vector<4x384xf32>
    %c0_12 = arith.constant 0 : index
    %c0_13 = arith.constant 0 : index
    %c2 = arith.constant 2 : index
    %13 = vector.load %arg1[%c0_12, %c0_13, %c2] : memref<1x4x512xf32, #tpu.memory_space<vmem>>, vector<1x4x384xf32>
    %14 = vector.shape_cast %13 : vector<1x4x384xf32> to vector<4x384xf32>
    %c2_14 = arith.constant 2 : index
    %c0_15 = arith.constant 0 : index
    %c0_16 = arith.constant 0 : index
    %15 = vector.load %arg2[%c2_14, %c0_15, %c0_16] : memref<9x4x4xf32, #tpu.memory_space<vmem>>, vector<1x4x4xf32>
    %16 = vector.shape_cast %15 : vector<1x4x4xf32> to vector<4x4xf32>
    %cst_17 = arith.constant dense<0.000000e+00> : vector<4x384xf32>
    %17 = tpu.matmul %16, %14, %cst_17 {dimension_numbers = #tpu.dot_dimension_numbers<[1], [0], [0], [1], [0, 0, 1, 1], [], []>} : vector<4x4xf32>, vector<4x384xf32>, vector<4x384xf32> -> vector<4x384xf32>
    %18 = arith.addf %12, %17 : vector<4x384xf32>
    %c0_18 = arith.constant 0 : index
    %c0_19 = arith.constant 0 : index
    %c18 = arith.constant 18 : index
    %19 = vector.load %arg1[%c0_18, %c0_19, %c18] : memref<1x4x512xf32, #tpu.memory_space<vmem>>, vector<1x4x384xf32>
    %20 = vector.shape_cast %19 : vector<1x4x384xf32> to vector<4x384xf32>
    %c3 = arith.constant 3 : index
    %c0_20 = arith.constant 0 : index
    %c0_21 = arith.constant 0 : index
    %21 = vector.load %arg2[%c3, %c0_20, %c0_21] : memref<9x4x4xf32, #tpu.memory_space<vmem>>, vector<1x4x4xf32>
    %22 = vector.shape_cast %21 : vector<1x4x4xf32> to vector<4x4xf32>
    %cst_22 = arith.constant dense<0.000000e+00> : vector<4x384xf32>
    %23 = tpu.matmul %22, %20, %cst_22 {dimension_numbers = #tpu.dot_dimension_numbers<[1], [0], [0], [1], [0, 0, 1, 1], [], []>} : vector<4x4xf32>, vector<4x384xf32>, vector<4x384xf32> -> vector<4x384xf32>
    %24 = arith.addf %18, %23 : vector<4x384xf32>
    %c0_23 = arith.constant 0 : index
    %c0_24 = arith.constant 0 : index
    %c19 = arith.constant 19 : index
    %25 = vector.load %arg1[%c0_23, %c0_24, %c19] : memref<1x4x512xf32, #tpu.memory_space<vmem>>, vector<1x4x384xf32>
    %26 = vector.shape_cast %25 : vector<1x4x384xf32> to vector<4x384xf32>
    %c4 = arith.constant 4 : index
    %c0_25 = arith.constant 0 : index
    %c0_26 = arith.constant 0 : index
    %27 = vector.load %arg2[%c4, %c0_25, %c0_26] : memref<9x4x4xf32, #tpu.memory_space<vmem>>, vector<1x4x4xf32>
    %28 = vector.shape_cast %27 : vector<1x4x4xf32> to vector<4x4xf32>
    %cst_27 = arith.constant dense<0.000000e+00> : vector<4x384xf32>
    %29 = tpu.matmul %28, %26, %cst_27 {dimension_numbers = #tpu.dot_dimension_numbers<[1], [0], [0], [1], [0, 0, 1, 1], [], []>} : vector<4x4xf32>, vector<4x384xf32>, vector<4x384xf32> -> vector<4x384xf32>
    %30 = arith.addf %24, %29 : vector<4x384xf32>
    %c0_28 = arith.constant 0 : index
    %c0_29 = arith.constant 0 : index
    %c20 = arith.constant 20 : index
    %31 = vector.load %arg1[%c0_28, %c0_29, %c20] : memref<1x4x512xf32, #tpu.memory_space<vmem>>, vector<1x4x384xf32>
    %32 = vector.shape_cast %31 : vector<1x4x384xf32> to vector<4x384xf32>
    %c5 = arith.constant 5 : index
    %c0_30 = arith.constant 0 : index
    %c0_31 = arith.constant 0 : index
    %33 = vector.load %arg2[%c5, %c0_30, %c0_31] : memref<9x4x4xf32, #tpu.memory_space<vmem>>, vector<1x4x4xf32>
    %34 = vector.shape_cast %33 : vector<1x4x4xf32> to vector<4x4xf32>
    %cst_32 = arith.constant dense<0.000000e+00> : vector<4x384xf32>
    %35 = tpu.matmul %34, %32, %cst_32 {dimension_numbers = #tpu.dot_dimension_numbers<[1], [0], [0], [1], [0, 0, 1, 1], [], []>} : vector<4x4xf32>, vector<4x384xf32>, vector<4x384xf32> -> vector<4x384xf32>
    %36 = arith.addf %30, %35 : vector<4x384xf32>
    %c0_33 = arith.constant 0 : index
    %c0_34 = arith.constant 0 : index
    %c36 = arith.constant 36 : index
    %37 = vector.load %arg1[%c0_33, %c0_34, %c36] : memref<1x4x512xf32, #tpu.memory_space<vmem>>, vector<1x4x384xf32>
    %38 = vector.shape_cast %37 : vector<1x4x384xf32> to vector<4x384xf32>
    %c6 = arith.constant 6 : index
    %c0_35 = arith.constant 0 : index
    %c0_36 = arith.constant 0 : index
    %39 = vector.load %arg2[%c6, %c0_35, %c0_36] : memref<9x4x4xf32, #tpu.memory_space<vmem>>, vector<1x4x4xf32>
    %40 = vector.shape_cast %39 : vector<1x4x4xf32> to vector<4x4xf32>
    %cst_37 = arith.constant dense<0.000000e+00> : vector<4x384xf32>
    %41 = tpu.matmul %40, %38, %cst_37 {dimension_numbers = #tpu.dot_dimension_numbers<[1], [0], [0], [1], [0, 0, 1, 1], [], []>} : vector<4x4xf32>, vector<4x384xf32>, vector<4x384xf32> -> vector<4x384xf32>
    %42 = arith.addf %36, %41 : vector<4x384xf32>
    %c0_38 = arith.constant 0 : index
    %c0_39 = arith.constant 0 : index
    %c37 = arith.constant 37 : index
    %43 = vector.load %arg1[%c0_38, %c0_39, %c37] : memref<1x4x512xf32, #tpu.memory_space<vmem>>, vector<1x4x384xf32>
    %44 = vector.shape_cast %43 : vector<1x4x384xf32> to vector<4x384xf32>
    %c7 = arith.constant 7 : index
    %c0_40 = arith.constant 0 : index
    %c0_41 = arith.constant 0 : index
    %45 = vector.load %arg2[%c7, %c0_40, %c0_41] : memref<9x4x4xf32, #tpu.memory_space<vmem>>, vector<1x4x4xf32>
    %46 = vector.shape_cast %45 : vector<1x4x4xf32> to vector<4x4xf32>
    %cst_42 = arith.constant dense<0.000000e+00> : vector<4x384xf32>
    %47 = tpu.matmul %46, %44, %cst_42 {dimension_numbers = #tpu.dot_dimension_numbers<[1], [0], [0], [1], [0, 0, 1, 1], [], []>} : vector<4x4xf32>, vector<4x384xf32>, vector<4x384xf32> -> vector<4x384xf32>
    %48 = arith.addf %42, %47 : vector<4x384xf32>
    %c0_43 = arith.constant 0 : index
    %c0_44 = arith.constant 0 : index
    %c38 = arith.constant 38 : index
    %49 = vector.load %arg1[%c0_43, %c0_44, %c38] : memref<1x4x512xf32, #tpu.memory_space<vmem>>, vector<1x4x384xf32>
    %50 = vector.shape_cast %49 : vector<1x4x384xf32> to vector<4x384xf32>
    %c8 = arith.constant 8 : index
    %c0_45 = arith.constant 0 : index
    %c0_46 = arith.constant 0 : index
    %51 = vector.load %arg2[%c8, %c0_45, %c0_46] : memref<9x4x4xf32, #tpu.memory_space<vmem>>, vector<1x4x4xf32>
    %52 = vector.shape_cast %51 : vector<1x4x4xf32> to vector<4x4xf32>
    %cst_47 = arith.constant dense<0.000000e+00> : vector<4x384xf32>
    %53 = tpu.matmul %52, %50, %cst_47 {dimension_numbers = #tpu.dot_dimension_numbers<[1], [0], [0], [1], [0, 0, 1, 1], [], []>} : vector<4x4xf32>, vector<4x384xf32>, vector<4x384xf32> -> vector<4x384xf32>
    %54 = arith.addf %48, %53 : vector<4x384xf32>
    %c0_48 = arith.constant 0 : index
    %c0_49 = arith.constant 0 : index
    %55 = vector.load %arg3[%c0_48, %c0_49] : memref<4x1xf32, #tpu.memory_space<vmem>>, vector<4x1xf32>
    %56 = vector.broadcast %55 : vector<4x1xf32> to vector<4x384xf32>
    %57 = arith.addf %54, %56 : vector<4x384xf32>
    %cst_50 = arith.constant 0.000000e+00 : f32
    %58 = vector.broadcast %cst_50 : f32 to vector<4x384xf32>
    %59 = arith.maximumf %57, %58 : vector<4x384xf32>
    %c0_51 = arith.constant 0 : index
    %c0_52 = arith.constant 0 : index
    %60 = vector.load %arg4[%c0_51, %c0_52] : memref<4x1xf32, #tpu.memory_space<vmem>>, vector<4x1xf32>
    %61 = vector.broadcast %60 : vector<4x1xf32> to vector<4x384xf32>
    %62 = arith.mulf %59, %61 : vector<4x384xf32>
    %cst_53 = arith.constant dense<0.000000e+00> : vector<384xf32>
    %63 = vector.multi_reduction <add>, %62, %cst_53 [0] : vector<4x384xf32> to vector<384xf32>
    %64 = vector.shape_cast %63 : vector<384xf32> to vector<1x384xf32>
    %c0_54 = arith.constant 0 : index
    %65 = memref.load %arg5[%c0_54] : memref<1xf32, #tpu.memory_space<smem>>
    %66 = vector.broadcast %65 : f32 to vector<1x384xf32>
    %67 = arith.addf %64, %66 : vector<1x384xf32>
    %68 = vector.shape_cast %67 : vector<1x384xf32> to vector<1x1x384xf32>
    %c0_55 = arith.constant 0 : index
    %c0_56 = arith.constant 0 : index
    %c0_57 = arith.constant 0 : index
    %69 = vector.load %arg6[%c0_55, %c0_56, %c0_57] : memref<1x1x384xf32, #tpu.memory_space<vmem>>, vector<1x1x384xf32>
    tpu.vector_store %arg6[%c0_55, %c0_56, %c0_57], %68 {strides = array<i32>} : memref<1x1x384xf32, #tpu.memory_space<vmem>>, vector<1x1x384xf32>,
    return
  }
  func.func @transform_0(%arg0: i32) -> (i32, i32, i32) {
    %c0_i32 = arith.constant 0 : i32
    %c0_i32_0 = arith.constant 0 : i32
    %c0_i32_1 = arith.constant 0 : i32
    return %arg0, %c0_i32, %c0_i32_0 : i32, i32, i32
  }
  func.func @transform_1(%arg0: i32) -> (i32, i32, i32) {
    %c0_i32 = arith.constant 0 : i32
    %c0_i32_0 = arith.constant 0 : i32
    %c0_i32_1 = arith.constant 0 : i32
    %c0_i32_2 = arith.constant 0 : i32
    return %c0_i32, %c0_i32_0, %c0_i32_1 : i32, i32, i32
  }
  func.func @transform_2(%arg0: i32) -> (i32, i32) {
    %c0_i32 = arith.constant 0 : i32
    %c0_i32_0 = arith.constant 0 : i32
    %c0_i32_1 = arith.constant 0 : i32
    return %c0_i32, %c0_i32_0 : i32, i32
  }
  func.func @transform_3(%arg0: i32) -> (i32, i32) {
    %c0_i32 = arith.constant 0 : i32
    %c0_i32_0 = arith.constant 0 : i32
    %c0_i32_1 = arith.constant 0 : i32
    return %c0_i32, %c0_i32_0 : i32, i32
  }
  func.func @transform_4(%arg0: i32) -> i32 {
    %c0_i32 = arith.constant 0 : i32
    %c0_i32_0 = arith.constant 0 : i32
    return %c0_i32 : i32
  }
  func.func @transform_5(%arg0: i32) -> (i32, i32, i32) {
    %c0_i32 = arith.constant 0 : i32
    %c0_i32_0 = arith.constant 0 : i32
    %c0_i32_1 = arith.constant 0 : i32
    return %arg0, %c0_i32, %c0_i32_0 : i32, i32, i32
  }
}

</mosaic_0001>

<llo_original>
// kernel: tpu_custom_call.1
$region0: #{tpu_custom_call.1}
  #allocation0 [shape = 'u32[]', space=smem, size = 0x4, offset = 0x4, fixed_abs, tag = 'smem constant byte address 0x4 - core index']
  #allocation1 [shape = 'u32[72,128]{1,0:T(1,128)}', space=vmem, size = 0x9000, scoped, tag = 'internal scratch']
  #allocation2 [shape = 'f32[1]{0:T(128)S(6)}', space=smem, size = 0x200, scoped, tag = 'scoped memory for tpu_custom_call.1']
  %s0 = inlined_call_operand.vmem [shape: f32[2,4,512], index: 0, kind: input, shape index: {}]
  %s1 = inlined_call_operand.vmem [shape: f32[9,4,4], index: 1, kind: input, shape index: {}]
  %s2 = inlined_call_operand.vmem [shape: f32[4,1], index: 2, kind: input, shape index: {}]
  %s3 = inlined_call_operand.vmem [shape: f32[4,1], index: 3, kind: input, shape index: {}]
  %s4 = inlined_call_operand.<no memory space> [shape: f32[1], index: 4, kind: input, shape index: {}]
  %s5 = inlined_call_operand.hbm [shape: f32[2,1,384], index: 5, kind: output, shape index: {}]
  %s6 = sld [smem:[#allocation0]]
  $region53: #{tpu_custom_call.1} parent=0
    _
  %s8 = ssub.s32 1, %s6
  %s9 = scalar_select 0, %s8, %s6
  %10 = sst [smem:[#allocation2]] %s4
  $region1: #{tpu_custom_call.1} parent=0
    #allocation3 [shape = 'u8[3072]{0}', space=vmem, size = 0xc00, scoped, tag = 'output window, operand 0']
    #allocation4 [shape = 's32[2]{0}', space=sflag, size = 0x8, scoped, tag = 'scoped memory for tpu_custom_call.1']
    %11 = vsyncpa [#allocation4], 0
    %s12 = scalar_lea.sflag [#allocation4], 1
    %13 = vsyncpa %s12, 0
    loop: start=0, step=1, limit=4
    $region2: #{tpu_custom_call.1} parent=1 // loop_pre_header
      _
    $region3: #{tpu_custom_call.1} parent=1 // loop_header
      %s15 = sphi 0, %s19
      %p16 = scmp.ge.s32.totalorder %s15, 4
      %s25 = sphi 0, %s27
      %s28 = sphi 0, %s25
      %s29 = sphi 0, %s28
      %s45 = sphi 0, %s29
      %s49 = sphi 0, %s49
      %s51 = sphi 0, %s49
      %s52 = sphi 0, %s51
      %s66 = sphi 0, %s52
      %s70 = sphi 0, %s70
      %s72 = sphi 0, %s70
      %s73 = sphi 0, %s72
      %s87 = sphi 0, %s73
      %s91 = sphi 0, %s91
      %s93 = sphi 0, %s91
      %s94 = sphi 0, %s93
      %s108 = sphi 0, %s94
      %s112 = sphi 0, %s112
      %s114 = sphi 0, %s112
      %s115 = sphi 0, %s114
      %s129 = sphi 0, %s115
      %s135 = sphi 0, %s137
      %s138 = sphi 0, %s135
      %s139 = sphi 0, %s138
      %s155 = sphi 0, %s139
    $region4: #{tpu_custom_call.1} parent=1 // loop_header_branch
      %18 = sbr.rel (%p16) target = $region8
    $region5: #{tpu_custom_call.1} parent=1 // loop_body
      %s20 = ssub.s32 %s15, 1
      %s21 = ssub.s32 %s15, 2
      %s22 = sadd.s32 %s15, 1
      %s23 = ssub.s32 %s15, %s22
      %p24 = scmp.eq.s32.totalorder %s23, 0
      %s26 = sadd.s32 %s25, 1
      %s27 = scalar_select %p24, %s25, %s26
      %p30 = pneg %p24
      %p31 = scmp.eq.s32.totalorder %s15, 1
      %p32 = por %p30, %p31
      %p33 = scmp.ne.s32.totalorder %s25, %s28
      %p34 = scmp.eq.s32.totalorder %s15, 0
      %p35 = por %p33, %p34
      %p36 = scmp.ne.s32.totalorder %s25, %s28
      %p37 = scmp.eq.s32.totalorder %s20, 1
      %p38 = por %p36, %p37
      %p39 = scmp.ne.s32.totalorder %s28, %s29
      %p40 = scmp.eq.s32.totalorder %s20, 0
      %p41 = por %p39, %p40
      %p42 = scmp.ne.s32.totalorder %s28, %s29
      %p43 = scmp.eq.s32.totalorder %s21, 1
      %p44 = por %p42, %p43
      %p46 = scmp.ne.s32.totalorder %s29, %s45
      %p47 = scmp.eq.s32.totalorder %s21, 0
      %p48 = por %p46, %p47
      %s50 = sadd.s32 %s49, 1
      %p53 = scmp.eq.s32.totalorder %s15, 1
      %p54 = scmp.ne.s32.totalorder %s49, %s51
      %p55 = scmp.eq.s32.totalorder %s15, 0
      %p56 = por %p54, %p55
      %p57 = scmp.ne.s32.totalorder %s49, %s51
      %p58 = scmp.eq.s32.totalorder %s20, 1
      %p59 = por %p57, %p58
      %p60 = scmp.ne.s32.totalorder %s51, %s52
      %p61 = scmp.eq.s32.totalorder %s20, 0
      %p62 = por %p60, %p61
      %p63 = scmp.ne.s32.totalorder %s51, %s52
      %p64 = scmp.eq.s32.totalorder %s21, 1
      %p65 = por %p63, %p64
      %p67 = scmp.ne.s32.totalorder %s52, %s66
      %p68 = scmp.eq.s32.totalorder %s21, 0
      %p69 = por %p67, %p68
      %s71 = sadd.s32 %s70, 1
      %p74 = scmp.eq.s32.totalorder %s15, 1
      %p75 = scmp.ne.s32.totalorder %s70, %s72
      %p76 = scmp.eq.s32.totalorder %s15, 0
      %p77 = por %p75, %p76
      %p78 = scmp.ne.s32.totalorder %s70, %s72
      %p79 = scmp.eq.s32.totalorder %s20, 1
      %p80 = por %p78, %p79
      %p81 = scmp.ne.s32.totalorder %s72, %s73
      %p82 = scmp.eq.s32.totalorder %s20, 0
      %p83 = por %p81, %p82
      %p84 = scmp.ne.s32.totalorder %s72, %s73
      %p85 = scmp.eq.s32.totalorder %s21, 1
      %p86 = por %p84, %p85
      %p88 = scmp.ne.s32.totalorder %s73, %s87
      %p89 = scmp.eq.s32.totalorder %s21, 0
      %p90 = por %p88, %p89
      %s92 = sadd.s32 %s91, 1
      %p95 = scmp.eq.s32.totalorder %s15, 1
      %p96 = scmp.ne.s32.totalorder %s91, %s93
      %p97 = scmp.eq.s32.totalorder %s15, 0
      %p98 = por %p96, %p97
      %p99 = scmp.ne.s32.totalorder %s91, %s93
      %p100 = scmp.eq.s32.totalorder %s20, 1
      %p101 = por %p99, %p100
      %p102 = scmp.ne.s32.totalorder %s93, %s94
      %p103 = scmp.eq.s32.totalorder %s20, 0
      %p104 = por %p102, %p103
      %p105 = scmp.ne.s32.totalorder %s93, %s94
      %p106 = scmp.eq.s32.totalorder %s21, 1
      %p107 = por %p105, %p106
      %p109 = scmp.ne.s32.totalorder %s94, %s108
      %p110 = scmp.eq.s32.totalorder %s21, 0
      %p111 = por %p109, %p110
      %s113 = sadd.s32 %s112, 1
      %p116 = scmp.eq.s32.totalorder %s15, 1
      %p117 = scmp.ne.s32.totalorder %s112, %s114
      %p118 = scmp.eq.s32.totalorder %s15, 0
      %p119 = por %p117, %p118
      %p120 = scmp.ne.s32.totalorder %s112, %s114
      %p121 = scmp.eq.s32.totalorder %s20, 1
      %p122 = por %p120, %p121
      %p123 = scmp.ne.s32.totalorder %s114, %s115
      %p124 = scmp.eq.s32.totalorder %s20, 0
      %p125 = por %p123, %p124
      %p126 = scmp.ne.s32.totalorder %s114, %s115
      %p127 = scmp.eq.s32.totalorder %s21, 1
      %p128 = por %p126, %p127
      %p130 = scmp.ne.s32.totalorder %s115, %s129
      %p131 = scmp.eq.s32.totalorder %s21, 0
      %p132 = por %p130, %p131
      %s133 = ssub.s32 %s15, %s22
      %p134 = scmp.eq.s32.totalorder %s133, 0
      %s136 = sadd.s32 %s135, 1
      %s137 = scalar_select %p134, %s135, %s136
      %p140 = pneg %p134
      %p141 = scmp.eq.s32.totalorder %s15, 1
      %p142 = por %p140, %p141
      %p143 = scmp.ne.s32.totalorder %s135, %s138
      %p144 = scmp.eq.s32.totalorder %s15, 0
      %p145 = por %p143, %p144
      %p146 = scmp.ne.s32.totalorder %s135, %s138
      %p147 = scmp.eq.s32.totalorder %s20, 1
      %p148 = por %p146, %p147
      %p149 = scmp.ne.s32.totalorder %s138, %s139
      %p150 = scmp.eq.s32.totalorder %s20, 0
      %p151 = por %p149, %p150
      %p152 = scmp.ne.s32.totalorder %s138, %s139
      %p153 = scmp.eq.s32.totalorder %s21, 1
      %p154 = por %p152, %p153
      %p156 = scmp.ne.s32.totalorder %s139, %s155
      %p157 = scmp.eq.s32.totalorder %s21, 0
      %p158 = por %p156, %p157
      %p159 = scmp.le.s32.totalorder 1, %s15
      %p160 = scmp.lt.s32.totalorder %s15, 3
      %p161 = pnand %p159, %p160
      %p162 = pneg %p161
      // Predicated region
      $region9: #{tpu_custom_call.1} parent=5 // pred_check
        _
      $region10: #{tpu_custom_call.1} parent=5 // pred_check_branch
        %164 = sbr.rel (%p161) target = $region12
      $region11: #{tpu_custom_call.1} parent=5 // pred_region
        %s165 = ssub.s32 %s15, 1
        // Predicated region
        $region13: #{tpu_custom_call.1} parent=11 // pred_check
          %p166 = pneg %p62
        $region14: #{tpu_custom_call.1} parent=11 // pred_check_branch
          %168 = sbr.rel (%p166) target = $region16
        $region15: #{tpu_custom_call.1} parent=11 // pred_region
          _
        $region16: #{tpu_custom_call.1} parent=11 // pred_fallthru
          _
        // Predicated region
        $region17: #{tpu_custom_call.1} parent=11 // pred_check
          %p169 = pneg %p83
        $region18: #{tpu_custom_call.1} parent=11 // pred_check_branch
          %171 = sbr.rel (%p169) target = $region20
        $region19: #{tpu_custom_call.1} parent=11 // pred_region
          _
        $region20: #{tpu_custom_call.1} parent=11 // pred_fallthru
          _
        // Predicated region
        $region21: #{tpu_custom_call.1} parent=11 // pred_check
          %p172 = pneg %p104
        $region22: #{tpu_custom_call.1} parent=11 // pred_check_branch
          %174 = sbr.rel (%p172) target = $region24
        $region23: #{tpu_custom_call.1} parent=11 // pred_region
          _
        $region24: #{tpu_custom_call.1} parent=11 // pred_fallthru
          _
        // Predicated region
        $region25: #{tpu_custom_call.1} parent=11 // pred_check
          %p175 = pneg %p125
        $region26: #{tpu_custom_call.1} parent=11 // pred_check_branch
          %177 = sbr.rel (%p175) target = $region28
        $region27: #{tpu_custom_call.1} parent=11 // pred_region
          _
        $region28: #{tpu_custom_call.1} parent=11 // pred_fallthru
          _
      $region12: #{tpu_custom_call.1} parent=5 // pred_fallthru
        _
      %p178 = scmp.lt.s32.totalorder %s15, 2
      // Predicated region
      $region29: #{tpu_custom_call.1} parent=5 // pred_check
        %p179 = pneg %p178
      $region30: #{tpu_custom_call.1} parent=5 // pred_check_branch
        %181 = sbr.rel (%p179) target = $region32
      $region31: #{tpu_custom_call.1} parent=5 // pred_region
        // Predicated region
        $region33: #{tpu_custom_call.1} parent=31 // pred_check
          %p182 = pneg %p35
        $region34: #{tpu_custom_call.1} parent=31 // pred_check_branch
          %184 = sbr.rel (%p182) target = $region36
        $region35: #{tpu_custom_call.1} parent=31 // pred_region
          %p185 = scmp.lt.s32.totalorder %s15, 1
          %s186 = scalar_select %p185, %s15, 1
          %s187 = smul.addr %s186, 4
          %s188 = smul.addr %s187, 4
          %s189 = scalar_lea.vmem %s0, %s188
        $region36: #{tpu_custom_call.1} parent=31 // pred_fallthru
          _
      $region32: #{tpu_custom_call.1} parent=5 // pred_fallthru
        _
      %p190 = scmp.le.s32.totalorder 1, %s15
      %p191 = scmp.lt.s32.totalorder %s15, 3
      %p192 = pnand %p190, %p191
      %p193 = pneg %p192
      // Predicated region
      $region37: #{tpu_custom_call.1} parent=5 // pred_check
        _
      $region38: #{tpu_custom_call.1} parent=5 // pred_check_branch
        %195 = sbr.rel (%p192) target = $region40
      $region39: #{tpu_custom_call.1} parent=5 // pred_region
        %s196 = ssub.s32 %s15, 1
        %p197 = scmp.lt.s32.totalorder %s20, 1
        %s198 = scalar_select %p197, %s20, 1
        %s199 = smul.addr %s198, 4
        %s200 = smul.addr %s199, 4
        %s201 = scalar_lea.vmem %s0, %s200
        %p202 = pneg %p41
        %p203 = pneg %p38
        %p204 = pneg %p62
        %p205 = pneg %p59
        %p206 = pneg %p83
        %p207 = pneg %p80
        %p208 = pneg %p104
        %p209 = pneg %p101
        %p210 = pneg %p125
        %p211 = pneg %p122
        %p212 = pneg %p151
        %p213 = pneg %p148
        %s214 = sand.u32 %s138, 1
        %s215 = scalar_lea.sflag [#allocation4], %s214
        %s216 = sand.u32 %s138, 1
        %s217 = smul.addr %s216, 3
        %s218 = scalar_lea.vmem [#allocation3], %s217
        %p219 = scmp.lt.s32.totalorder %s20, 1
        %s220 = scalar_select %p219, %s20, 1
        %s221 = smul.addr %s220, 4
        %s222 = smul.addr %s221, 4
        %s223 = scalar_lea.vmem %s0, %s222
        %v224 = vld [vmem:[%s223] sm:$0xff]
        %v225 = vld [vmem:[%s223 + $0x8] sm:$0xf]
        %v226 = vld [vmem:[%s1] sm:$0xf]
        %v227 = vld [vmem:[%s223] sm:$0xff]
        %v228 = vld [vmem:[%s223 + $0x8] sm:$0xff]
        %s229 = scalar_lea.vmem %s1, 4
        %v230 = vld [vmem:[%s229] sm:$0xf]
        %233 = vst [vmem:[#allocation1] ss:$2 sm:$0xff] %v227
        %s234 = scalar_lea.vmem [#allocation1], 16
        %235 = vst [vmem:[%s234] ss:$2 sm:$0xff] %v228
        %v236 = vld.sshfl [vmem:[#allocation1] sm:$0xff pattern:$0x75316420]
        %v237 = vld.sshfl [vmem:[#allocation1 + $0x8] sm:$0xff pattern:$0x75316420]
        %v238 = vld.sshfl [vmem:[#allocation1 + $0x10] sm:$0xff pattern:$0x75316420]
        %v239 = vld.sshfl [vmem:[#allocation1 + $0x18] sm:$0xff pattern:$0x75316420]
        %240 = vrot.lane.b32.xlu0 %v236, 127
        %v241 = vpop.permute.xlu0 %240
        %242 = vrot.lane.b32.xlu0 %v237, 127
        %v243 = vpop.permute.xlu0 %242
        %244 = vrot.lane.b32.xlu0 %v238, 127
        %v245 = vpop.permute.xlu0 %244
        %246 = vrot.lane.b32.xlu0 %v239, 127
        %v247 = vpop.permute.xlu0 %246
        %vm248 = vcmask 1039360
        %v249 = vsel %vm248, %v241, %v243
        %v250 = vsel %vm248, %v243, %v245
        %v251 = vsel %vm248, %v245, %v247
        %vm252 = vcmask 31744
        %v254 = vsel %vm252, %v230, 0
        %vm256 = vcmask 1043456
        %v257 = vsel %vm256, %v249, 0
        %v259 = vsel %vm256, %v250, 0
        %v261 = vsel %vm256, %v251, 0
        %263 = vmatpush.msra.mxu0 0.0
        %264 = vmatpush.msra.mxu0 0.0
        %265 = vmatpush.msra.mxu0 0.0
        %266 = vmatpush.msra.mxu0 0.0
        %267 = vmatpush.msra.mxu0 0.0
        %268 = vmatpush.msra.mxu0 0.0
        %269 = vmatpush.msra.mxu0 0.0
        %270 = vmatpush.msra.mxu0 0.0
        %271 = vmatpush.msra.mxu0 0.0
        %272 = vmatpush.msra.mxu0 0.0
        %273 = vmatpush.msra.mxu0 0.0
        %274 = vmatpush.msra.mxu0 0.0
        %275 = vmatpush.msra.mxu0 0.0
        %276 = vmatpush.msra.mxu0 0.0
        %277 = vmatpush.msra.mxu0 0.0
        %278 = vmatpush.msra.mxu0 %v257
        %279 = vmatmul.f32.gmra.mxu0 %v254
        %v280 = vpop.f32.mrf.mxu0
        %v281 = vadd.f32 0.0, %v280
        %282 = vdwg.mxu0
        %283 = vmatpush.msra.mxu0 0.0
        %284 = vmatpush.msra.mxu0 0.0
        %285 = vmatpush.msra.mxu0 0.0
        %286 = vmatpush.msra.mxu0 0.0
        %287 = vmatpush.msra.mxu0 0.0
        %288 = vmatpush.msra.mxu0 0.0
        %289 = vmatpush.msra.mxu0 0.0
        %290 = vmatpush.msra.mxu0 0.0
        %291 = vmatpush.msra.mxu0 0.0
        %292 = vmatpush.msra.mxu0 0.0
        %293 = vmatpush.msra.mxu0 0.0
        %294 = vmatpush.msra.mxu0 0.0
        %295 = vmatpush.msra.mxu0 0.0
        %296 = vmatpush.msra.mxu0 0.0
        %297 = vmatpush.msra.mxu0 0.0
        %298 = vmatpush.msra.mxu0 %v259
        %299 = vmatmul.f32.gmra.mxu0 %v254
        %v300 = vpop.f32.mrf.mxu0
        %v301 = vadd.f32 0.0, %v300
        %302 = vdwg.mxu0
        %303 = vmatpush.msra.mxu0 0.0
        %304 = vmatpush.msra.mxu0 0.0
        %305 = vmatpush.msra.mxu0 0.0
        %306 = vmatpush.msra.mxu0 0.0
        %307 = vmatpush.msra.mxu0 0.0
        %308 = vmatpush.msra.mxu0 0.0
        %309 = vmatpush.msra.mxu0 0.0
        %310 = vmatpush.msra.mxu0 0.0
        %311 = vmatpush.msra.mxu0 0.0
        %312 = vmatpush.msra.mxu0 0.0
        %313 = vmatpush.msra.mxu0 0.0
        %314 = vmatpush.msra.mxu0 0.0
        %315 = vmatpush.msra.mxu0 0.0
        %316 = vmatpush.msra.mxu0 0.0
        %317 = vmatpush.msra.mxu0 0.0
        %318 = vmatpush.msra.mxu0 %v261
        %319 = vmatmul.f32.gmra.mxu0 %v254
        %v320 = vpop.f32.mrf.mxu0
        %v321 = vadd.f32 0.0, %v320
        %322 = vdwg.mxu0
        %325 = vst [vmem:[#allocation1] ss:$2 sm:$0xff] %v224
        %s326 = scalar_lea.vmem [#allocation1], 16
        %327 = vst [vmem:[%s326] ss:$2 sm:$0xff] %v225
        %v328 = vld.sshfl [vmem:[#allocation1] sm:$0xff pattern:$0x75316420]
        %v329 = vld.sshfl [vmem:[#allocation1 + $0x8] sm:$0xff pattern:$0x75316420]
        %v330 = vld.sshfl [vmem:[#allocation1 + $0x10] sm:$0xff pattern:$0x75316420]
        %v332 = vsel %vm252, %v226, 0
        %v334 = vsel %vm256, %v328, 0
        %v336 = vsel %vm256, %v329, 0
        %v338 = vsel %vm256, %v330, 0
        %340 = vmatpush.msra.mxu0 0.0
        %341 = vmatpush.msra.mxu0 0.0
        %342 = vmatpush.msra.mxu0 0.0
        %343 = vmatpush.msra.mxu0 0.0
        %344 = vmatpush.msra.mxu0 0.0
        %345 = vmatpush.msra.mxu0 0.0
        %346 = vmatpush.msra.mxu0 0.0
        %347 = vmatpush.msra.mxu0 0.0
        %348 = vmatpush.msra.mxu0 0.0
        %349 = vmatpush.msra.mxu0 0.0
        %350 = vmatpush.msra.mxu0 0.0
        %351 = vmatpush.msra.mxu0 0.0
        %352 = vmatpush.msra.mxu0 0.0
        %353 = vmatpush.msra.mxu0 0.0
        %354 = vmatpush.msra.mxu0 0.0
        %355 = vmatpush.msra.mxu0 %v334
        %356 = vmatmul.f32.gmra.mxu0 %v332
        %v357 = vpop.f32.mrf.mxu0
        %v358 = vadd.f32 %v281, %v357
        %359 = vdwg.mxu0
        %360 = vmatpush.msra.mxu0 0.0
        %361 = vmatpush.msra.mxu0 0.0
        %362 = vmatpush.msra.mxu0 0.0
        %363 = vmatpush.msra.mxu0 0.0
        %364 = vmatpush.msra.mxu0 0.0
        %365 = vmatpush.msra.mxu0 0.0
        %366 = vmatpush.msra.mxu0 0.0
        %367 = vmatpush.msra.mxu0 0.0
        %368 = vmatpush.msra.mxu0 0.0
        %369 = vmatpush.msra.mxu0 0.0
        %370 = vmatpush.msra.mxu0 0.0
        %371 = vmatpush.msra.mxu0 0.0
        %372 = vmatpush.msra.mxu0 0.0
        %373 = vmatpush.msra.mxu0 0.0
        %374 = vmatpush.msra.mxu0 0.0
        %375 = vmatpush.msra.mxu0 %v336
        %376 = vmatmul.f32.gmra.mxu0 %v332
        %v377 = vpop.f32.mrf.mxu0
        %v378 = vadd.f32 %v301, %v377
        %379 = vdwg.mxu0
        %380 = vmatpush.msra.mxu0 0.0
        %381 = vmatpush.msra.mxu0 0.0
        %382 = vmatpush.msra.mxu0 0.0
        %383 = vmatpush.msra.mxu0 0.0
        %384 = vmatpush.msra.mxu0 0.0
        %385 = vmatpush.msra.mxu0 0.0
        %386 = vmatpush.msra.mxu0 0.0
        %387 = vmatpush.msra.mxu0 0.0
        %388 = vmatpush.msra.mxu0 0.0
        %389 = vmatpush.msra.mxu0 0.0
        %390 = vmatpush.msra.mxu0 0.0
        %391 = vmatpush.msra.mxu0 0.0
        %392 = vmatpush.msra.mxu0 0.0
        %393 = vmatpush.msra.mxu0 0.0
        %394 = vmatpush.msra.mxu0 0.0
        %395 = vmatpush.msra.mxu0 %v338
        %396 = vmatmul.f32.gmra.mxu0 %v332
        %v397 = vpop.f32.mrf.mxu0
        %v398 = vadd.f32 %v321, %v397
        %399 = vdwg.mxu0
        %v400 = vld [vmem:[%s223] sm:$0xff]
        %v401 = vld [vmem:[%s223 + $0x8] sm:$0xff]
        %s402 = scalar_lea.vmem %s1, 8
        %v403 = vld [vmem:[%s402] sm:$0xf]
        %406 = vst [vmem:[#allocation1] ss:$2 sm:$0xff] %v400
        %s407 = scalar_lea.vmem [#allocation1], 16
        %408 = vst [vmem:[%s407] ss:$2 sm:$0xff] %v401
        %v409 = vld.sshfl [vmem:[#allocation1] sm:$0xff pattern:$0x75316420]
        %v410 = vld.sshfl [vmem:[#allocation1 + $0x8] sm:$0xff pattern:$0x75316420]
        %v411 = vld.sshfl [vmem:[#allocation1 + $0x10] sm:$0xff pattern:$0x75316420]
        %v412 = vld.sshfl [vmem:[#allocation1 + $0x18] sm:$0xff pattern:$0x75316420]
        %413 = vrot.lane.b32.xlu0 %v409, 126
        %v414 = vpop.permute.xlu0 %413
        %415 = vrot.lane.b32.xlu0 %v410, 126
        %v416 = vpop.permute.xlu0 %415
        %417 = vrot.lane.b32.xlu0 %v411, 126
        %v418 = vpop.permute.xlu0 %417
        %419 = vrot.lane.b32.xlu0 %v412, 126
        %v420 = vpop.permute.xlu0 %419
        %vm421 = vcmask 1031168
        %v422 = vsel %vm421, %v414, %v416
        %v423 = vsel %vm421, %v416, %v418
        %v424 = vsel %vm421, %v418, %v420
        %v426 = vsel %vm252, %v403, 0
        %v428 = vsel %vm256, %v422, 0
        %v430 = vsel %vm256, %v423, 0
        %v432 = vsel %vm256, %v424, 0
        %434 = vmatpush.msra.mxu0 0.0
        %435 = vmatpush.msra.mxu0 0.0
        %436 = vmatpush.msra.mxu0 0.0
        %437 = vmatpush.msra.mxu0 0.0
        %438 = vmatpush.msra.mxu0 0.0
        %439 = vmatpush.msra.mxu0 0.0
        %440 = vmatpush.msra.mxu0 0.0
        %441 = vmatpush.msra.mxu0 0.0
        %442 = vmatpush.msra.mxu0 0.0
        %443 = vmatpush.msra.mxu0 0.0
        %444 = vmatpush.msra.mxu0 0.0
        %445 = vmatpush.msra.mxu0 0.0
        %446 = vmatpush.msra.mxu0 0.0
        %447 = vmatpush.msra.mxu0 0.0
        %448 = vmatpush.msra.mxu0 0.0
        %449 = vmatpush.msra.mxu0 %v428
        %450 = vmatmul.f32.gmra.mxu0 %v426
        %v451 = vpop.f32.mrf.mxu0
        %v452 = vadd.f32 0.0, %v451
        %453 = vdwg.mxu0
        %454 = vmatpush.msra.mxu0 0.0
        %455 = vmatpush.msra.mxu0 0.0
        %456 = vmatpush.msra.mxu0 0.0
        %457 = vmatpush.msra.mxu0 0.0
        %458 = vmatpush.msra.mxu0 0.0
        %459 = vmatpush.msra.mxu0 0.0
        %460 = vmatpush.msra.mxu0 0.0
        %461 = vmatpush.msra.mxu0 0.0
        %462 = vmatpush.msra.mxu0 0.0
        %463 = vmatpush.msra.mxu0 0.0
        %464 = vmatpush.msra.mxu0 0.0
        %465 = vmatpush.msra.mxu0 0.0
        %466 = vmatpush.msra.mxu0 0.0
        %467 = vmatpush.msra.mxu0 0.0
        %468 = vmatpush.msra.mxu0 0.0
        %469 = vmatpush.msra.mxu0 %v430
        %470 = vmatmul.f32.gmra.mxu0 %v426
        %v471 = vpop.f32.mrf.mxu0
        %v472 = vadd.f32 0.0, %v471
        %473 = vdwg.mxu0
        %474 = vmatpush.msra.mxu0 0.0
        %475 = vmatpush.msra.mxu0 0.0
        %476 = vmatpush.msra.mxu0 0.0
        %477 = vmatpush.msra.mxu0 0.0
        %478 = vmatpush.msra.mxu0 0.0
        %479 = vmatpush.msra.mxu0 0.0
        %480 = vmatpush.msra.mxu0 0.0
        %481 = vmatpush.msra.mxu0 0.0
        %482 = vmatpush.msra.mxu0 0.0
        %483 = vmatpush.msra.mxu0 0.0
        %484 = vmatpush.msra.mxu0 0.0
        %485 = vmatpush.msra.mxu0 0.0
        %486 = vmatpush.msra.mxu0 0.0
        %487 = vmatpush.msra.mxu0 0.0
        %488 = vmatpush.msra.mxu0 0.0
        %489 = vmatpush.msra.mxu0 %v432
        %490 = vmatmul.f32.gmra.mxu0 %v426
        %v491 = vpop.f32.mrf.mxu0
        %v492 = vadd.f32 0.0, %v491
        %493 = vdwg.mxu0
        %v494 = vadd.f32 %v358, %v452
        %v495 = vadd.f32 %v378, %v472
        %v496 = vadd.f32 %v398, %v492
        %v497 = vld [vmem:[%s223] sm:$0xff]
        %v498 = vld [vmem:[%s223 + $0x8] sm:$0xff]
        %s499 = scalar_lea.vmem %s1, 12
        %v500 = vld [vmem:[%s499] sm:$0xf]
        %503 = vst [vmem:[#allocation1] ss:$2 sm:$0xff] %v497
        %s504 = scalar_lea.vmem [#allocation1], 16
        %505 = vst [vmem:[%s504] ss:$2 sm:$0xff] %v498
        %v506 = vld.sshfl [vmem:[#allocation1] sm:$0xff pattern:$0x75316420]
        %v507 = vld.sshfl [vmem:[#allocation1 + $0x8] sm:$0xff pattern:$0x75316420]
        %v508 = vld.sshfl [vmem:[#allocation1 + $0x10] sm:$0xff pattern:$0x75316420]
        %v509 = vld.sshfl [vmem:[#allocation1 + $0x18] sm:$0xff pattern:$0x75316420]
        %510 = vrot.lane.b32.xlu0 %v506, 110
        %v511 = vpop.permute.xlu0 %510
        %512 = vrot.lane.b32.xlu0 %v507, 110
        %v513 = vpop.permute.xlu0 %512
        %514 = vrot.lane.b32.xlu0 %v508, 110
        %v515 = vpop.permute.xlu0 %514
        %516 = vrot.lane.b32.xlu0 %v509, 110
        %v517 = vpop.permute.xlu0 %516
        %vm518 = vcmask 900096
        %v519 = vsel %vm518, %v511, %v513
        %v520 = vsel %vm518, %v513, %v515
        %v521 = vsel %vm518, %v515, %v517
        %v523 = vsel %vm252, %v500, 0
        %v525 = vsel %vm256, %v519, 0
        %v527 = vsel %vm256, %v520, 0
        %v529 = vsel %vm256, %v521, 0
        %531 = vmatpush.msra.mxu0 0.0
        %532 = vmatpush.msra.mxu0 0.0
        %533 = vmatpush.msra.mxu0 0.0
        %534 = vmatpush.msra.mxu0 0.0
        %535 = vmatpush.msra.mxu0 0.0
        %536 = vmatpush.msra.mxu0 0.0
        %537 = vmatpush.msra.mxu0 0.0
        %538 = vmatpush.msra.mxu0 0.0
        %539 = vmatpush.msra.mxu0 0.0
        %540 = vmatpush.msra.mxu0 0.0
        %541 = vmatpush.msra.mxu0 0.0
        %542 = vmatpush.msra.mxu0 0.0
        %543 = vmatpush.msra.mxu0 0.0
        %544 = vmatpush.msra.mxu0 0.0
        %545 = vmatpush.msra.mxu0 0.0
        %546 = vmatpush.msra.mxu0 %v525
        %547 = vmatmul.f32.gmra.mxu0 %v523
        %v548 = vpop.f32.mrf.mxu0
        %v549 = vadd.f32 0.0, %v548
        %550 = vdwg.mxu0
        %551 = vmatpush.msra.mxu0 0.0
        %552 = vmatpush.msra.mxu0 0.0
        %553 = vmatpush.msra.mxu0 0.0
        %554 = vmatpush.msra.mxu0 0.0
        %555 = vmatpush.msra.mxu0 0.0
        %556 = vmatpush.msra.mxu0 0.0
        %557 = vmatpush.msra.mxu0 0.0
        %558 = vmatpush.msra.mxu0 0.0
        %559 = vmatpush.msra.mxu0 0.0
        %560 = vmatpush.msra.mxu0 0.0
        %561 = vmatpush.msra.mxu0 0.0
        %562 = vmatpush.msra.mxu0 0.0
        %563 = vmatpush.msra.mxu0 0.0
        %564 = vmatpush.msra.mxu0 0.0
        %565 = vmatpush.msra.mxu0 0.0
        %566 = vmatpush.msra.mxu0 %v527
        %567 = vmatmul.f32.gmra.mxu0 %v523
        %v568 = vpop.f32.mrf.mxu0
        %v569 = vadd.f32 0.0, %v568
        %570 = vdwg.mxu0
        %571 = vmatpush.msra.mxu0 0.0
        %572 = vmatpush.msra.mxu0 0.0
        %573 = vmatpush.msra.mxu0 0.0
        %574 = vmatpush.msra.mxu0 0.0
        %575 = vmatpush.msra.mxu0 0.0
        %576 = vmatpush.msra.mxu0 0.0
        %577 = vmatpush.msra.mxu0 0.0
        %578 = vmatpush.msra.mxu0 0.0
        %579 = vmatpush.msra.mxu0 0.0
        %580 = vmatpush.msra.mxu0 0.0
        %581 = vmatpush.msra.mxu0 0.0
        %582 = vmatpush.msra.mxu0 0.0
        %583 = vmatpush.msra.mxu0 0.0
        %584 = vmatpush.msra.mxu0 0.0
        %585 = vmatpush.msra.mxu0 0.0
        %586 = vmatpush.msra.mxu0 %v529
        %587 = vmatmul.f32.gmra.mxu0 %v523
        %v588 = vpop.f32.mrf.mxu0
        %v589 = vadd.f32 0.0, %v588
        %590 = vdwg.mxu0
        %v591 = vadd.f32 %v494, %v549
        %v592 = vadd.f32 %v495, %v569
        %v593 = vadd.f32 %v496, %v589
        %v594 = vld [vmem:[%s223] sm:$0xff]
        %v595 = vld [vmem:[%s223 + $0x8] sm:$0xff]
        %s596 = scalar_lea.vmem %s1, 16
        %v597 = vld [vmem:[%s596] sm:$0xf]
        %600 = vst [vmem:[#allocation1] ss:$2 sm:$0xff] %v594
        %s601 = scalar_lea.vmem [#allocation1], 16
        %602 = vst [vmem:[%s601] ss:$2 sm:$0xff] %v595
        %v603 = vld.sshfl [vmem:[#allocation1] sm:$0xff pattern:$0x75316420]
        %v604 = vld.sshfl [vmem:[#allocation1 + $0x8] sm:$0xff pattern:$0x75316420]
        %v605 = vld.sshfl [vmem:[#allocation1 + $0x10] sm:$0xff pattern:$0x75316420]
        %v606 = vld.sshfl [vmem:[#allocation1 + $0x18] sm:$0xff pattern:$0x75316420]
        %607 = vrot.lane.b32.xlu0 %v603, 109
        %v608 = vpop.permute.xlu0 %607
        %609 = vrot.lane.b32.xlu0 %v604, 109
        %v610 = vpop.permute.xlu0 %609
        %611 = vrot.lane.b32.xlu0 %v605, 109
        %v612 = vpop.permute.xlu0 %611
        %613 = vrot.lane.b32.xlu0 %v606, 109
        %v614 = vpop.permute.xlu0 %613
        %vm615 = vcmask 891904
        %v616 = vsel %vm615, %v608, %v610
        %v617 = vsel %vm615, %v610, %v612
        %v618 = vsel %vm615, %v612, %v614
        %v620 = vsel %vm252, %v597, 0
        %v622 = vsel %vm256, %v616, 0
        %v624 = vsel %vm256, %v617, 0
        %v626 = vsel %vm256, %v618, 0
        %628 = vmatpush.msra.mxu0 0.0
        %629 = vmatpush.msra.mxu0 0.0
        %630 = vmatpush.msra.mxu0 0.0
        %631 = vmatpush.msra.mxu0 0.0
        %632 = vmatpush.msra.mxu0 0.0
        %633 = vmatpush.msra.mxu0 0.0
        %634 = vmatpush.msra.mxu0 0.0
        %635 = vmatpush.msra.mxu0 0.0
        %636 = vmatpush.msra.mxu0 0.0
        %637 = vmatpush.msra.mxu0 0.0
        %638 = vmatpush.msra.mxu0 0.0
        %639 = vmatpush.msra.mxu0 0.0
        %640 = vmatpush.msra.mxu0 0.0
        %641 = vmatpush.msra.mxu0 0.0
        %642 = vmatpush.msra.mxu0 0.0
        %643 = vmatpush.msra.mxu0 %v622
        %644 = vmatmul.f32.gmra.mxu0 %v620
        %v645 = vpop.f32.mrf.mxu0
        %v646 = vadd.f32 0.0, %v645
        %647 = vdwg.mxu0
        %648 = vmatpush.msra.mxu0 0.0
        %649 = vmatpush.msra.mxu0 0.0
        %650 = vmatpush.msra.mxu0 0.0
        %651 = vmatpush.msra.mxu0 0.0
        %652 = vmatpush.msra.mxu0 0.0
        %653 = vmatpush.msra.mxu0 0.0
        %654 = vmatpush.msra.mxu0 0.0
        %655 = vmatpush.msra.mxu0 0.0
        %656 = vmatpush.msra.mxu0 0.0
        %657 = vmatpush.msra.mxu0 0.0
        %658 = vmatpush.msra.mxu0 0.0
        %659 = vmatpush.msra.mxu0 0.0
        %660 = vmatpush.msra.mxu0 0.0
        %661 = vmatpush.msra.mxu0 0.0
        %662 = vmatpush.msra.mxu0 0.0
        %663 = vmatpush.msra.mxu0 %v624
        %664 = vmatmul.f32.gmra.mxu0 %v620
        %v665 = vpop.f32.mrf.mxu0
        %v666 = vadd.f32 0.0, %v665
        %667 = vdwg.mxu0
        %668 = vmatpush.msra.mxu0 0.0
        %669 = vmatpush.msra.mxu0 0.0
        %670 = vmatpush.msra.mxu0 0.0
        %671 = vmatpush.msra.mxu0 0.0
        %672 = vmatpush.msra.mxu0 0.0
        %673 = vmatpush.msra.mxu0 0.0
        %674 = vmatpush.msra.mxu0 0.0
        %675 = vmatpush.msra.mxu0 0.0
        %676 = vmatpush.msra.mxu0 0.0
        %677 = vmatpush.msra.mxu0 0.0
        %678 = vmatpush.msra.mxu0 0.0
        %679 = vmatpush.msra.mxu0 0.0
        %680 = vmatpush.msra.mxu0 0.0
        %681 = vmatpush.msra.mxu0 0.0
        %682 = vmatpush.msra.mxu0 0.0
        %683 = vmatpush.msra.mxu0 %v626
        %684 = vmatmul.f32.gmra.mxu0 %v620
        %v685 = vpop.f32.mrf.mxu0
        %v686 = vadd.f32 0.0, %v685
        %687 = vdwg.mxu0
        %v688 = vadd.f32 %v591, %v646
        %v689 = vadd.f32 %v592, %v666
        %v690 = vadd.f32 %v593, %v686
        %v691 = vld [vmem:[%s223] sm:$0xff]
        %v692 = vld [vmem:[%s223 + $0x8] sm:$0xff]
        %s693 = scalar_lea.vmem %s1, 20
        %v694 = vld [vmem:[%s693] sm:$0xf]
        %697 = vst [vmem:[#allocation1] ss:$2 sm:$0xff] %v691
        %s698 = scalar_lea.vmem [#allocation1], 16
        %699 = vst [vmem:[%s698] ss:$2 sm:$0xff] %v692
        %v700 = vld.sshfl [vmem:[#allocation1] sm:$0xff pattern:$0x75316420]
        %v701 = vld.sshfl [vmem:[#allocation1 + $0x8] sm:$0xff pattern:$0x75316420]
        %v702 = vld.sshfl [vmem:[#allocation1 + $0x10] sm:$0xff pattern:$0x75316420]
        %v703 = vld.sshfl [vmem:[#allocation1 + $0x18] sm:$0xff pattern:$0x75316420]
        %704 = vrot.lane.b32.xlu0 %v700, 108
        %v705 = vpop.permute.xlu0 %704
        %706 = vrot.lane.b32.xlu0 %v701, 108
        %v707 = vpop.permute.xlu0 %706
        %708 = vrot.lane.b32.xlu0 %v702, 108
        %v709 = vpop.permute.xlu0 %708
        %710 = vrot.lane.b32.xlu0 %v703, 108
        %v711 = vpop.permute.xlu0 %710
        %vm712 = vcmask 883712
        %v713 = vsel %vm712, %v705, %v707
        %v714 = vsel %vm712, %v707, %v709
        %v715 = vsel %vm712, %v709, %v711
        %v717 = vsel %vm252, %v694, 0
        %v719 = vsel %vm256, %v713, 0
        %v721 = vsel %vm256, %v714, 0
        %v723 = vsel %vm256, %v715, 0
        %725 = vmatpush.msra.mxu0 0.0
        %726 = vmatpush.msra.mxu0 0.0
        %727 = vmatpush.msra.mxu0 0.0
        %728 = vmatpush.msra.mxu0 0.0
        %729 = vmatpush.msra.mxu0 0.0
        %730 = vmatpush.msra.mxu0 0.0
        %731 = vmatpush.msra.mxu0 0.0
        %732 = vmatpush.msra.mxu0 0.0
        %733 = vmatpush.msra.mxu0 0.0
        %734 = vmatpush.msra.mxu0 0.0
        %735 = vmatpush.msra.mxu0 0.0
        %736 = vmatpush.msra.mxu0 0.0
        %737 = vmatpush.msra.mxu0 0.0
        %738 = vmatpush.msra.mxu0 0.0
        %739 = vmatpush.msra.mxu0 0.0
        %740 = vmatpush.msra.mxu0 %v719
        %741 = vmatmul.f32.gmra.mxu0 %v717
        %v742 = vpop.f32.mrf.mxu0
        %v743 = vadd.f32 0.0, %v742
        %744 = vdwg.mxu0
        %745 = vmatpush.msra.mxu0 0.0
        %746 = vmatpush.msra.mxu0 0.0
        %747 = vmatpush.msra.mxu0 0.0
        %748 = vmatpush.msra.mxu0 0.0
        %749 = vmatpush.msra.mxu0 0.0
        %750 = vmatpush.msra.mxu0 0.0
        %751 = vmatpush.msra.mxu0 0.0
        %752 = vmatpush.msra.mxu0 0.0
        %753 = vmatpush.msra.mxu0 0.0
        %754 = vmatpush.msra.mxu0 0.0
        %755 = vmatpush.msra.mxu0 0.0
        %756 = vmatpush.msra.mxu0 0.0
        %757 = vmatpush.msra.mxu0 0.0
        %758 = vmatpush.msra.mxu0 0.0
        %759 = vmatpush.msra.mxu0 0.0
        %760 = vmatpush.msra.mxu0 %v721
        %761 = vmatmul.f32.gmra.mxu0 %v717
        %v762 = vpop.f32.mrf.mxu0
        %v763 = vadd.f32 0.0, %v762
        %764 = vdwg.mxu0
        %765 = vmatpush.msra.mxu0 0.0
        %766 = vmatpush.msra.mxu0 0.0
        %767 = vmatpush.msra.mxu0 0.0
        %768 = vmatpush.msra.mxu0 0.0
        %769 = vmatpush.msra.mxu0 0.0
        %770 = vmatpush.msra.mxu0 0.0
        %771 = vmatpush.msra.mxu0 0.0
        %772 = vmatpush.msra.mxu0 0.0
        %773 = vmatpush.msra.mxu0 0.0
        %774 = vmatpush.msra.mxu0 0.0
        %775 = vmatpush.msra.mxu0 0.0
        %776 = vmatpush.msra.mxu0 0.0
        %777 = vmatpush.msra.mxu0 0.0
        %778 = vmatpush.msra.mxu0 0.0
        %779 = vmatpush.msra.mxu0 0.0
        %780 = vmatpush.msra.mxu0 %v723
        %781 = vmatmul.f32.gmra.mxu0 %v717
        %v782 = vpop.f32.mrf.mxu0
        %v783 = vadd.f32 0.0, %v782
        %784 = vdwg.mxu0
        %v785 = vadd.f32 %v688, %v743
        %v786 = vadd.f32 %v689, %v763
        %v787 = vadd.f32 %v690, %v783
        %v788 = vld [vmem:[%s223] sm:$0xff]
        %v789 = vld [vmem:[%s223 + $0x8] sm:$0xff]
        %s790 = scalar_lea.vmem %s1, 24
        %v791 = vld [vmem:[%s790] sm:$0xf]
        %794 = vst [vmem:[#allocation1] ss:$2 sm:$0xff] %v788
        %s795 = scalar_lea.vmem [#allocation1], 16
        %796 = vst [vmem:[%s795] ss:$2 sm:$0xff] %v789
        %v797 = vld.sshfl [vmem:[#allocation1] sm:$0xff pattern:$0x75316420]
        %v798 = vld.sshfl [vmem:[#allocation1 + $0x8] sm:$0xff pattern:$0x75316420]
        %v799 = vld.sshfl [vmem:[#allocation1 + $0x10] sm:$0xff pattern:$0x75316420]
        %v800 = vld.sshfl [vmem:[#allocation1 + $0x18] sm:$0xff pattern:$0x75316420]
        %801 = vrot.lane.b32.xlu0 %v797, 92
        %v802 = vpop.permute.xlu0 %801
        %803 = vrot.lane.b32.xlu0 %v798, 92
        %v804 = vpop.permute.xlu0 %803
        %805 = vrot.lane.b32.xlu0 %v799, 92
        %v806 = vpop.permute.xlu0 %805
        %807 = vrot.lane.b32.xlu0 %v800, 92
        %v808 = vpop.permute.xlu0 %807
        %vm809 = vcmask 752640
        %v810 = vsel %vm809, %v802, %v804
        %v811 = vsel %vm809, %v804, %v806
        %v812 = vsel %vm809, %v806, %v808
        %v814 = vsel %vm252, %v791, 0
        %v816 = vsel %vm256, %v810, 0
        %v818 = vsel %vm256, %v811, 0
        %v820 = vsel %vm256, %v812, 0
        %822 = vmatpush.msra.mxu0 0.0
        %823 = vmatpush.msra.mxu0 0.0
        %824 = vmatpush.msra.mxu0 0.0
        %825 = vmatpush.msra.mxu0 0.0
        %826 = vmatpush.msra.mxu0 0.0
        %827 = vmatpush.msra.mxu0 0.0
        %828 = vmatpush.msra.mxu0 0.0
        %829 = vmatpush.msra.mxu0 0.0
        %830 = vmatpush.msra.mxu0 0.0
        %831 = vmatpush.msra.mxu0 0.0
        %832 = vmatpush.msra.mxu0 0.0
        %833 = vmatpush.msra.mxu0 0.0
        %834 = vmatpush.msra.mxu0 0.0
        %835 = vmatpush.msra.mxu0 0.0
        %836 = vmatpush.msra.mxu0 0.0
        %837 = vmatpush.msra.mxu0 %v816
        %838 = vmatmul.f32.gmra.mxu0 %v814
        %v839 = vpop.f32.mrf.mxu0
        %v840 = vadd.f32 0.0, %v839
        %841 = vdwg.mxu0
        %842 = vmatpush.msra.mxu0 0.0
        %843 = vmatpush.msra.mxu0 0.0
        %844 = vmatpush.msra.mxu0 0.0
        %845 = vmatpush.msra.mxu0 0.0
        %846 = vmatpush.msra.mxu0 0.0
        %847 = vmatpush.msra.mxu0 0.0
        %848 = vmatpush.msra.mxu0 0.0
        %849 = vmatpush.msra.mxu0 0.0
        %850 = vmatpush.msra.mxu0 0.0
        %851 = vmatpush.msra.mxu0 0.0
        %852 = vmatpush.msra.mxu0 0.0
        %853 = vmatpush.msra.mxu0 0.0
        %854 = vmatpush.msra.mxu0 0.0
        %855 = vmatpush.msra.mxu0 0.0
        %856 = vmatpush.msra.mxu0 0.0
        %857 = vmatpush.msra.mxu0 %v818
        %858 = vmatmul.f32.gmra.mxu0 %v814
        %v859 = vpop.f32.mrf.mxu0
        %v860 = vadd.f32 0.0, %v859
        %861 = vdwg.mxu0
        %862 = vmatpush.msra.mxu0 0.0
        %863 = vmatpush.msra.mxu0 0.0
        %864 = vmatpush.msra.mxu0 0.0
        %865 = vmatpush.msra.mxu0 0.0
        %866 = vmatpush.msra.mxu0 0.0
        %867 = vmatpush.msra.mxu0 0.0
        %868 = vmatpush.msra.mxu0 0.0
        %869 = vmatpush.msra.mxu0 0.0
        %870 = vmatpush.msra.mxu0 0.0
        %871 = vmatpush.msra.mxu0 0.0
        %872 = vmatpush.msra.mxu0 0.0
        %873 = vmatpush.msra.mxu0 0.0
        %874 = vmatpush.msra.mxu0 0.0
        %875 = vmatpush.msra.mxu0 0.0
        %876 = vmatpush.msra.mxu0 0.0
        %877 = vmatpush.msra.mxu0 %v820
        %878 = vmatmul.f32.gmra.mxu0 %v814
        %v879 = vpop.f32.mrf.mxu0
        %v880 = vadd.f32 0.0, %v879
        %881 = vdwg.mxu0
        %v882 = vadd.f32 %v785, %v840
        %v883 = vadd.f32 %v786, %v860
        %v884 = vadd.f32 %v787, %v880
        %v885 = vld [vmem:[%s223] sm:$0xff]
        %v886 = vld [vmem:[%s223 + $0x8] sm:$0xff]
        %s887 = scalar_lea.vmem %s1, 28
        %v888 = vld [vmem:[%s887] sm:$0xf]
        %891 = vst [vmem:[#allocation1] ss:$2 sm:$0xff] %v885
        %s892 = scalar_lea.vmem [#allocation1], 16
        %893 = vst [vmem:[%s892] ss:$2 sm:$0xff] %v886
        %v894 = vld.sshfl [vmem:[#allocation1] sm:$0xff pattern:$0x75316420]
        %v895 = vld.sshfl [vmem:[#allocation1 + $0x8] sm:$0xff pattern:$0x75316420]
        %v896 = vld.sshfl [vmem:[#allocation1 + $0x10] sm:$0xff pattern:$0x75316420]
        %v897 = vld.sshfl [vmem:[#allocation1 + $0x18] sm:$0xff pattern:$0x75316420]
        %898 = vrot.lane.b32.xlu0 %v894, 91
        %v899 = vpop.permute.xlu0 %898
        %900 = vrot.lane.b32.xlu0 %v895, 91
        %v901 = vpop.permute.xlu0 %900
        %902 = vrot.lane.b32.xlu0 %v896, 91
        %v903 = vpop.permute.xlu0 %902
        %904 = vrot.lane.b32.xlu0 %v897, 91
        %v905 = vpop.permute.xlu0 %904
        %vm906 = vcmask 744448
        %v907 = vsel %vm906, %v899, %v901
        %v908 = vsel %vm906, %v901, %v903
        %v909 = vsel %vm906, %v903, %v905
        %v911 = vsel %vm252, %v888, 0
        %v913 = vsel %vm256, %v907, 0
        %v915 = vsel %vm256, %v908, 0
        %v917 = vsel %vm256, %v909, 0
        %919 = vmatpush.msra.mxu0 0.0
        %920 = vmatpush.msra.mxu0 0.0
        %921 = vmatpush.msra.mxu0 0.0
        %922 = vmatpush.msra.mxu0 0.0
        %923 = vmatpush.msra.mxu0 0.0
        %924 = vmatpush.msra.mxu0 0.0
        %925 = vmatpush.msra.mxu0 0.0
        %926 = vmatpush.msra.mxu0 0.0
        %927 = vmatpush.msra.mxu0 0.0
        %928 = vmatpush.msra.mxu0 0.0
        %929 = vmatpush.msra.mxu0 0.0
        %930 = vmatpush.msra.mxu0 0.0
        %931 = vmatpush.msra.mxu0 0.0
        %932 = vmatpush.msra.mxu0 0.0
        %933 = vmatpush.msra.mxu0 0.0
        %934 = vmatpush.msra.mxu0 %v913
        %935 = vmatmul.f32.gmra.mxu0 %v911
        %v936 = vpop.f32.mrf.mxu0
        %v937 = vadd.f32 0.0, %v936
        %938 = vdwg.mxu0
        %939 = vmatpush.msra.mxu0 0.0
        %940 = vmatpush.msra.mxu0 0.0
        %941 = vmatpush.msra.mxu0 0.0
        %942 = vmatpush.msra.mxu0 0.0
        %943 = vmatpush.msra.mxu0 0.0
        %944 = vmatpush.msra.mxu0 0.0
        %945 = vmatpush.msra.mxu0 0.0
        %946 = vmatpush.msra.mxu0 0.0
        %947 = vmatpush.msra.mxu0 0.0
        %948 = vmatpush.msra.mxu0 0.0
        %949 = vmatpush.msra.mxu0 0.0
        %950 = vmatpush.msra.mxu0 0.0
        %951 = vmatpush.msra.mxu0 0.0
        %952 = vmatpush.msra.mxu0 0.0
        %953 = vmatpush.msra.mxu0 0.0
        %954 = vmatpush.msra.mxu0 %v915
        %955 = vmatmul.f32.gmra.mxu0 %v911
        %v956 = vpop.f32.mrf.mxu0
        %v957 = vadd.f32 0.0, %v956
        %958 = vdwg.mxu0
        %959 = vmatpush.msra.mxu0 0.0
        %960 = vmatpush.msra.mxu0 0.0
        %961 = vmatpush.msra.mxu0 0.0
        %962 = vmatpush.msra.mxu0 0.0
        %963 = vmatpush.msra.mxu0 0.0
        %964 = vmatpush.msra.mxu0 0.0
        %965 = vmatpush.msra.mxu0 0.0
        %966 = vmatpush.msra.mxu0 0.0
        %967 = vmatpush.msra.mxu0 0.0
        %968 = vmatpush.msra.mxu0 0.0
        %969 = vmatpush.msra.mxu0 0.0
        %970 = vmatpush.msra.mxu0 0.0
        %971 = vmatpush.msra.mxu0 0.0
        %972 = vmatpush.msra.mxu0 0.0
        %973 = vmatpush.msra.mxu0 0.0
        %974 = vmatpush.msra.mxu0 %v917
        %975 = vmatmul.f32.gmra.mxu0 %v911
        %v976 = vpop.f32.mrf.mxu0
        %v977 = vadd.f32 0.0, %v976
        %978 = vdwg.mxu0
        %v979 = vadd.f32 %v882, %v937
        %v980 = vadd.f32 %v883, %v957
        %v981 = vadd.f32 %v884, %v977
        %v982 = vld [vmem:[%s223] sm:$0xff]
        %v983 = vld [vmem:[%s223 + $0x8] sm:$0xff]
        %s984 = scalar_lea.vmem %s1, 32
        %v985 = vld [vmem:[%s984] sm:$0xf]
        %988 = vst [vmem:[#allocation1] ss:$2 sm:$0xff] %v982
        %s989 = scalar_lea.vmem [#allocation1], 16
        %990 = vst [vmem:[%s989] ss:$2 sm:$0xff] %v983
        %v991 = vld.sshfl [vmem:[#allocation1] sm:$0xff pattern:$0x75316420]
        %v992 = vld.sshfl [vmem:[#allocation1 + $0x8] sm:$0xff pattern:$0x75316420]
        %v993 = vld.sshfl [vmem:[#allocation1 + $0x10] sm:$0xff pattern:$0x75316420]
        %v994 = vld.sshfl [vmem:[#allocation1 + $0x18] sm:$0xff pattern:$0x75316420]
        %995 = vrot.lane.b32.xlu0 %v991, 90
        %v996 = vpop.permute.xlu0 %995
        %997 = vrot.lane.b32.xlu0 %v992, 90
        %v998 = vpop.permute.xlu0 %997
        %999 = vrot.lane.b32.xlu0 %v993, 90
        %v1000 = vpop.permute.xlu0 %999
        %1001 = vrot.lane.b32.xlu0 %v994, 90
        %v1002 = vpop.permute.xlu0 %1001
        %vm1003 = vcmask 736256
        %v1004 = vsel %vm1003, %v996, %v998
        %v1005 = vsel %vm1003, %v998, %v1000
        %v1006 = vsel %vm1003, %v1000, %v1002
        %v1008 = vsel %vm252, %v985, 0
        %v1010 = vsel %vm256, %v1004, 0
        %v1012 = vsel %vm256, %v1005, 0
        %v1014 = vsel %vm256, %v1006, 0
        %1016 = vmatpush.msra.mxu0 0.0
        %1017 = vmatpush.msra.mxu0 0.0
        %1018 = vmatpush.msra.mxu0 0.0
        %1019 = vmatpush.msra.mxu0 0.0
        %1020 = vmatpush.msra.mxu0 0.0
        %1021 = vmatpush.msra.mxu0 0.0
        %1022 = vmatpush.msra.mxu0 0.0
        %1023 = vmatpush.msra.mxu0 0.0
        %1024 = vmatpush.msra.mxu0 0.0
        %1025 = vmatpush.msra.mxu0 0.0
        %1026 = vmatpush.msra.mxu0 0.0
        %1027 = vmatpush.msra.mxu0 0.0
        %1028 = vmatpush.msra.mxu0 0.0
        %1029 = vmatpush.msra.mxu0 0.0
        %1030 = vmatpush.msra.mxu0 0.0
        %1031 = vmatpush.msra.mxu0 %v1010
        %1032 = vmatmul.f32.gmra.mxu0 %v1008
        %v1033 = vpop.f32.mrf.mxu0
        %v1034 = vadd.f32 0.0, %v1033
        %1035 = vdwg.mxu0
        %1036 = vmatpush.msra.mxu0 0.0
        %1037 = vmatpush.msra.mxu0 0.0
        %1038 = vmatpush.msra.mxu0 0.0
        %1039 = vmatpush.msra.mxu0 0.0
        %1040 = vmatpush.msra.mxu0 0.0
        %1041 = vmatpush.msra.mxu0 0.0
        %1042 = vmatpush.msra.mxu0 0.0
        %1043 = vmatpush.msra.mxu0 0.0
        %1044 = vmatpush.msra.mxu0 0.0
        %1045 = vmatpush.msra.mxu0 0.0
        %1046 = vmatpush.msra.mxu0 0.0
        %1047 = vmatpush.msra.mxu0 0.0
        %1048 = vmatpush.msra.mxu0 0.0
        %1049 = vmatpush.msra.mxu0 0.0
        %1050 = vmatpush.msra.mxu0 0.0
        %1051 = vmatpush.msra.mxu0 %v1012
        %1052 = vmatmul.f32.gmra.mxu0 %v1008
        %v1053 = vpop.f32.mrf.mxu0
        %v1054 = vadd.f32 0.0, %v1053
        %1055 = vdwg.mxu0
        %1056 = vmatpush.msra.mxu0 0.0
        %1057 = vmatpush.msra.mxu0 0.0
        %1058 = vmatpush.msra.mxu0 0.0
        %1059 = vmatpush.msra.mxu0 0.0
        %1060 = vmatpush.msra.mxu0 0.0
        %1061 = vmatpush.msra.mxu0 0.0
        %1062 = vmatpush.msra.mxu0 0.0
        %1063 = vmatpush.msra.mxu0 0.0
        %1064 = vmatpush.msra.mxu0 0.0
        %1065 = vmatpush.msra.mxu0 0.0
        %1066 = vmatpush.msra.mxu0 0.0
        %1067 = vmatpush.msra.mxu0 0.0
        %1068 = vmatpush.msra.mxu0 0.0
        %1069 = vmatpush.msra.mxu0 0.0
        %1070 = vmatpush.msra.mxu0 0.0
        %1071 = vmatpush.msra.mxu0 %v1014
        %1072 = vmatmul.f32.gmra.mxu0 %v1008
        %v1073 = vpop.f32.mrf.mxu0
        %v1074 = vadd.f32 0.0, %v1073
        %1075 = vdwg.mxu0
        %v1076 = vadd.f32 %v979, %v1034
        %v1077 = vadd.f32 %v980, %v1054
        %v1078 = vadd.f32 %v981, %v1074
        %v1079 = vld [vmem:[%s2] sm:$0xf]
        %1081 = vset.pattern.permute.xlu0 0
        %1082 = vperm.xlu0 %1081, %v1079
        %v1083 = vpop.permute.xlu0 %1082
        %v1085 = vadd.f32 %v1076, %v1083
        %v1086 = vadd.f32 %v1077, %v1083
        %v1087 = vadd.f32 %v1078, %v1083
        %v1088 = vmax.f32 %v1085, 0.0
        %v1089 = vmax.f32 %v1086, 0.0
        %v1090 = vmax.f32 %v1087, 0.0
        %v1091 = vld [vmem:[%s3] sm:$0xf]
        %1093 = vset.pattern.permute.xlu0 0
        %1094 = vperm.xlu0 %1093, %v1091
        %v1095 = vpop.permute.xlu0 %1094
        %v1097 = vmul.f32 %v1088, %v1095
        %v1098 = vmul.f32 %v1089, %v1095
        %v1099 = vmul.f32 %v1090, %v1095
        %v1100 = vsel %vm256, %v1097, 0.0
        %v1101 = vrot.slane %v1100, 4
        %v1102 = vadd.f32 %v1100, %v1101
        %v1103 = vrot.slane %v1102, 2
        %v1104 = vadd.f32 %v1102, %v1103
        %v1105 = vrot.slane %v1104, 1
        %v1106 = vadd.f32 %v1104, %v1105
        %v1107 = vsel %vm256, %v1098, 0.0
        %v1108 = vrot.slane %v1107, 4
        %v1109 = vadd.f32 %v1107, %v1108
        %v1110 = vrot.slane %v1109, 2
        %v1111 = vadd.f32 %v1109, %v1110
        %v1112 = vrot.slane %v1111, 1
        %v1113 = vadd.f32 %v1111, %v1112
        %v1114 = vsel %vm256, %v1099, 0.0
        %v1115 = vrot.slane %v1114, 4
        %v1116 = vadd.f32 %v1114, %v1115
        %v1117 = vrot.slane %v1116, 2
        %v1118 = vadd.f32 %v1116, %v1117
        %v1119 = vrot.slane %v1118, 1
        %v1120 = vadd.f32 %v1118, %v1119
        %s1121 = sld [smem:[#allocation2]]
        %v1122 = vstv %s1121
        %v1123 = vadd.f32 %v1106, %v1122
        %v1124 = vadd.f32 %v1113, %v1122
        %v1125 = vadd.f32 %v1120, %v1122
        %v1129 = vrot.slane %v1124, 7
        %v1130 = vrot.slane %v1125, 6
        %vm1131 = vcmask 1040384
        %v1132 = vsel %vm1131, %v1123, %v1129
        %vm1133 = vcmask 1041408
        %v1134 = vsel %vm1133, %v1132, %v1130
        %v1136 = vlaneseq
        %vm1137 = vcmp.ge.s32.totalorder %v1136, 0
        %vm1138 = vcmp.lt.s32.totalorder %v1136, 384
        %vm1139 = vmand %vm1137, %vm1138
        %1140 = vst.msk [vmem:[%s218] sm:$0x7] %vm1139, %v1134
        %s1141 = sand.u32 %s138, 1
        %s1142 = scalar_lea.sflag [#allocation4], %s1141
        %s1143 = sand.u32 %s138, 1
        %s1144 = smul.addr %s1143, 3
        %s1145 = scalar_lea.vmem [#allocation3], %s1144
        // Predicated region
        $region41: #{tpu_custom_call.1} parent=39 // pred_check
          %p1146 = pneg %p148
        $region42: #{tpu_custom_call.1} parent=39 // pred_check_branch
          %1148 = sbr.rel (%p1146) target = $region44
        $region43: #{tpu_custom_call.1} parent=39 // pred_region
          %1150 = vsyncadd %s1142, 0
          %s1151 = smul.addr %s20, 3
          %s1152 = scalar_lea.hbm %s5, %s1151
          %s1154 = sshll.u32 %s1145, 4
          %s1155 = int_to_ptr.vmem [resolvable:$true] %s1154
          %s1156 = sshll.u32 %s1152, 4
          %s1157 = int_to_ptr.hbm [resolvable:$true] %s1156
          %1159 = dma.vmem_to_hbm [thread:$0]  %s1155, 48, %s1157, %s1142
        $region44: #{tpu_custom_call.1} parent=39 // pred_fallthru
          _
      $region40: #{tpu_custom_call.1} parent=5 // pred_fallthru
        _
      %p1160 = scmp.le.s32.totalorder 2, %s15
      // Predicated region
      $region45: #{tpu_custom_call.1} parent=5 // pred_check
        %p1161 = pneg %p1160
      $region46: #{tpu_custom_call.1} parent=5 // pred_check_branch
        %1163 = sbr.rel (%p1161) target = $region48
      $region47: #{tpu_custom_call.1} parent=5 // pred_region
        %s1164 = ssub.s32 %s15, 2
        // Predicated region
        $region49: #{tpu_custom_call.1} parent=47 // pred_check
          %p1165 = pneg %p154
        $region50: #{tpu_custom_call.1} parent=47 // pred_check_branch
          %1167 = sbr.rel (%p1165) target = $region52
        $region51: #{tpu_custom_call.1} parent=47 // pred_region
          %s1168 = sand.u32 %s139, 1
          %s1169 = scalar_lea.sflag [#allocation4], %s1168
          %s1170 = sand.u32 %s139, 1
          %s1171 = smul.addr %s1170, 3
          %s1172 = scalar_lea.vmem [#allocation3], %s1171
          %1174 = dma.done %s1169, 48
        $region52: #{tpu_custom_call.1} parent=47 // pred_fallthru
          _
      $region48: #{tpu_custom_call.1} parent=5 // pred_fallthru
        _
    $region6: #{tpu_custom_call.1} parent=1 // loop_footer
      %s19 = sadd.s32 1, %s15
    $region7: #{tpu_custom_call.1} parent=1 // loop_footer_branch
      %14 = sbr.rel target = $region3
    $region8: #{tpu_custom_call.1} parent=1 // loop_exit
      _
    %1175 = vsyncpa [#allocation4], 1
    %s1176 = scalar_lea.sflag [#allocation4], 1
    %1177 = vsyncpa %s1176, 1

</llo_original>
